<compile_context>
chip_gen: v6e
topology: v6e:2x2x1
jax: 0.10.0
libtpu: 0.0.40
codegen_flags: <defaults>
</compile_context>

<pallas_src>
import jax
import jax.numpy as jnp
from jax.experimental import pallas as pl
from jax.experimental.pallas import tpu as pltpu


def _scale_mul_kernel(x_ref, s_ref, o_ref):
    # x_ref: (C_TILE, HW) tile, s_ref: (C_TILE, 1) per-channel scale
    o_ref[...] = x_ref[...] * s_ref[...]


def _pick_c_tile(c, hw, itemsize):
    """Largest sublane-aligned divisor of c whose block fits a VMEM budget,
    preferring a tile that gives >= 2 grid steps (v7x megacore sharding)."""
    # sublane min-tile: f32 -> 8, bf16 -> 16, int8/fp8 -> 32
    sublane = {4: 8, 2: 16, 1: 32}.get(itemsize, 8)
    budget = 3 * 1024 * 1024  # bytes per (c_tile, hw) block; ~12 MiB pipelined
    candidates = [
        d for d in range(c, 0, -1)
        if c % d == 0 and (d % sublane == 0 or d == c)
    ]
    # Prefer a tile that both fits the budget and leaves >= 2 grid steps.
    for d in candidates:
        if d < c and d * hw * itemsize <= budget:
            return d
    # Otherwise the largest tile that fits (possibly the full array).
    for d in candidates:
        if d * hw * itemsize <= budget:
            return d
    # Nothing fits the budget (huge HW): fall back to the smallest legal tile.
    return candidates[-1]


def channel_scale_mul(x, scale):
    """Elementwise multiply x[N,C,H,W] by scale[N,C,1,1] (N must be 1)."""
    n, c, h, w = x.shape
    assert n == 1 and scale.shape == (1, c, 1, 1)
    hw = h * w
    x2 = x.reshape(c, hw)
    s2 = scale.reshape(c, 1).astype(x.dtype)

    c_tile = _pick_c_tile(c, hw, jnp.dtype(x.dtype).itemsize)
    grid = (c // c_tile,)

    out = pl.pallas_call(
        _scale_mul_kernel,
        out_shape=jax.ShapeDtypeStruct((c, hw), x.dtype),
        grid_spec=pl.GridSpec(
            grid=grid,
            in_specs=[
                pl.BlockSpec((c_tile, hw), lambda i: (i, 0)),
                pl.BlockSpec((c_tile, 1), lambda i: (i, 0)),
            ],
            out_specs=pl.BlockSpec((c_tile, hw), lambda i: (i, 0)),
        ),
        compiler_params=pltpu.CompilerParams(
            dimension_semantics=("parallel",),
        ),
    )(x2, s2)

    return out.reshape(n, c, h, w)


if __name__ == "__main__":
    key = jax.random.PRNGKey(0)
    k1, k2 = jax.random.split(key)
    # Small shapes consistent with the module's [1, 240, 56, 56] * [1, 240, 1, 1]
    # (c=16 exercises the 2-step parallel grid path: c_tile=8, grid=(2,)).
    x106 = jax.random.normal(k1, (1, 16, 16, 16), dtype=jnp.float32)
    x111 = jax.random.normal(k2, (1, 16, 1, 1), dtype=jnp.float32)

    out = channel_scale_mul(x106, x111)
    jax.block_until_ready(out)

    ref = x106 * x111
    assert out.shape == ref.shape
    assert jnp.allclose(out, ref, atol=1e-6, rtol=1e-6)
    print("KERNEL_OK")
</pallas_src>

<mosaic_0001>
module attributes {stable_mosaic.version = 11 : i64} {
  func.func @_scale_mul_kernel(%arg0: i32, %arg1: memref<8x256xf32, #tpu.memory_space<vmem>>, %arg2: memref<8x1xf32, #tpu.memory_space<vmem>>, %arg3: memref<8x256xf32, #tpu.memory_space<vmem>>) attributes {dimension_semantics = [#tpu.dimension_semantics<parallel>], iteration_bounds = array<i64: 2>, scalar_prefetch = 0 : i64, scratch_operands = 0 : i64, tpu.core_type = #tpu.core_type<tc>, window_params = [{transform_indices = @transform_0, window_bounds = array<i64: 8, 256>}, {transform_indices = @transform_1, window_bounds = array<i64: 8, 1>}, {transform_indices = @transform_2, window_bounds = array<i64: 8, 256>}]} {
    %c0 = arith.constant 0 : index
    %c0_0 = arith.constant 0 : index
    %0 = vector.load %arg1[%c0, %c0_0] : memref<8x256xf32, #tpu.memory_space<vmem>>, vector<8x256xf32>
    %c0_1 = arith.constant 0 : index
    %c0_2 = arith.constant 0 : index
    %1 = vector.load %arg2[%c0_1, %c0_2] : memref<8x1xf32, #tpu.memory_space<vmem>>, vector<8x1xf32>
    %2 = vector.broadcast %1 : vector<8x1xf32> to vector<8x256xf32>
    %3 = arith.mulf %0, %2 : vector<8x256xf32>
    %c0_3 = arith.constant 0 : index
    %c0_4 = arith.constant 0 : index
    %4 = vector.load %arg3[%c0_3, %c0_4] : memref<8x256xf32, #tpu.memory_space<vmem>>, vector<8x256xf32>
    tpu.vector_store %arg3[%c0_3, %c0_4], %3 {strides = array<i32>} : memref<8x256xf32, #tpu.memory_space<vmem>>, vector<8x256xf32>,
    return
  }
  func.func @transform_0(%arg0: i32) -> (i32, i32) {
    %c0_i32 = arith.constant 0 : i32
    %c0_i32_0 = arith.constant 0 : i32
    return %arg0, %c0_i32 : i32, i32
  }
  func.func @transform_1(%arg0: i32) -> (i32, i32) {
    %c0_i32 = arith.constant 0 : i32
    %c0_i32_0 = arith.constant 0 : i32
    return %arg0, %c0_i32 : i32, i32
  }
  func.func @transform_2(%arg0: i32) -> (i32, i32) {
    %c0_i32 = arith.constant 0 : i32
    %c0_i32_0 = arith.constant 0 : i32
    return %arg0, %c0_i32 : i32, i32
  }
}

</mosaic_0001>

<llo_original>
// kernel: tpu_custom_call.1
$region0: #{tpu_custom_call.1}
  #allocation0 [shape = 'u32[]', space=smem, size = 0x4, offset = 0x4, fixed_abs, tag = 'smem constant byte address 0x4 - core index']
  #allocation1 [shape = 'u32[144,128]{1,0:T(1,128)}', space=vmem, size = 0x12000, scoped, tag = 'internal scratch']
  %s0 = inlined_call_operand.hbm [shape: f32[16,256], index: 0, kind: input, shape index: {}]
  %s1 = inlined_call_operand.vmem [shape: f32[16,1], index: 1, kind: input, shape index: {}]
  %s2 = inlined_call_operand.hbm [shape: f32[16,256], index: 2, kind: output, shape index: {}]
  %s3 = sld [smem:[#allocation0]]
  $region45: #{tpu_custom_call.1} parent=0
    _
  %s5 = ssub.s32 1, %s3
  %s6 = scalar_select 0, %s5, %s3
  $region1: #{tpu_custom_call.1} parent=0
    #allocation2 [shape = 'u8[16384]{0}', space=vmem, size = 0x4000, scoped, tag = 'input window, operand 0']
    #allocation3 [shape = 's32[2]{0}', space=sflag, size = 0x8, scoped, tag = 'scoped memory for tpu_custom_call.1']
    #allocation4 [shape = 's32[2]{0}', space=sflag, size = 0x8, scoped, tag = 'scoped memory for tpu_custom_call.1']
    #allocation5 [shape = 'u8[16384]{0}', space=vmem, size = 0x4000, scoped, tag = 'output window, operand 0']
    %7 = vsyncpa [#allocation3], 0
    %s8 = scalar_lea.sflag [#allocation3], 1
    %9 = vsyncpa %s8, 0
    %10 = vsyncpa [#allocation4], 0
    %s11 = scalar_lea.sflag [#allocation4], 1
    %12 = vsyncpa %s11, 0
    loop: start=0, step=1, limit=4
    $region2: #{tpu_custom_call.1} parent=1 // loop_pre_header
      _
    $region3: #{tpu_custom_call.1} parent=1 // loop_header
      %s14 = sphi 0, %s18
      %p15 = scmp.ge.s32.totalorder %s14, 4
      %s24 = sphi 0, %s26
      %s27 = sphi 0, %s24
      %s28 = sphi 0, %s27
      %s44 = sphi 0, %s28
      %s50 = sphi 0, %s52
      %s53 = sphi 0, %s50
      %s54 = sphi 0, %s53
      %s70 = sphi 0, %s54
      %s76 = sphi 0, %s78
      %s79 = sphi 0, %s76
      %s80 = sphi 0, %s79
      %s96 = sphi 0, %s80
    $region4: #{tpu_custom_call.1} parent=1 // loop_header_branch
      %17 = sbr.rel (%p15) target = $region8
    $region5: #{tpu_custom_call.1} parent=1 // loop_body
      %s19 = ssub.s32 %s14, 1
      %s20 = ssub.s32 %s14, 2
      %s21 = sadd.s32 %s14, 1
      %s22 = ssub.s32 %s14, %s21
      %p23 = scmp.eq.s32.totalorder %s22, 0
      %s25 = sadd.s32 %s24, 1
      %s26 = scalar_select %p23, %s24, %s25
      %p29 = pneg %p23
      %p30 = scmp.eq.s32.totalorder %s14, 1
      %p31 = por %p29, %p30
      %p32 = scmp.ne.s32.totalorder %s24, %s27
      %p33 = scmp.eq.s32.totalorder %s14, 0
      %p34 = por %p32, %p33
      %p35 = scmp.ne.s32.totalorder %s24, %s27
      %p36 = scmp.eq.s32.totalorder %s19, 1
      %p37 = por %p35, %p36
      %p38 = scmp.ne.s32.totalorder %s27, %s28
      %p39 = scmp.eq.s32.totalorder %s19, 0
      %p40 = por %p38, %p39
      %p41 = scmp.ne.s32.totalorder %s27, %s28
      %p42 = scmp.eq.s32.totalorder %s20, 1
      %p43 = por %p41, %p42
      %p45 = scmp.ne.s32.totalorder %s28, %s44
      %p46 = scmp.eq.s32.totalorder %s20, 0
      %p47 = por %p45, %p46
      %s48 = ssub.s32 %s14, %s21
      %p49 = scmp.eq.s32.totalorder %s48, 0
      %s51 = sadd.s32 %s50, 1
      %s52 = scalar_select %p49, %s50, %s51
      %p55 = pneg %p49
      %p56 = scmp.eq.s32.totalorder %s14, 1
      %p57 = por %p55, %p56
      %p58 = scmp.ne.s32.totalorder %s50, %s53
      %p59 = scmp.eq.s32.totalorder %s14, 0
      %p60 = por %p58, %p59
      %p61 = scmp.ne.s32.totalorder %s50, %s53
      %p62 = scmp.eq.s32.totalorder %s19, 1
      %p63 = por %p61, %p62
      %p64 = scmp.ne.s32.totalorder %s53, %s54
      %p65 = scmp.eq.s32.totalorder %s19, 0
      %p66 = por %p64, %p65
      %p67 = scmp.ne.s32.totalorder %s53, %s54
      %p68 = scmp.eq.s32.totalorder %s20, 1
      %p69 = por %p67, %p68
      %p71 = scmp.ne.s32.totalorder %s54, %s70
      %p72 = scmp.eq.s32.totalorder %s20, 0
      %p73 = por %p71, %p72
      %s74 = ssub.s32 %s14, %s21
      %p75 = scmp.eq.s32.totalorder %s74, 0
      %s77 = sadd.s32 %s76, 1
      %s78 = scalar_select %p75, %s76, %s77
      %p81 = pneg %p75
      %p82 = scmp.eq.s32.totalorder %s14, 1
      %p83 = por %p81, %p82
      %p84 = scmp.ne.s32.totalorder %s76, %s79
      %p85 = scmp.eq.s32.totalorder %s14, 0
      %p86 = por %p84, %p85
      %p87 = scmp.ne.s32.totalorder %s76, %s79
      %p88 = scmp.eq.s32.totalorder %s19, 1
      %p89 = por %p87, %p88
      %p90 = scmp.ne.s32.totalorder %s79, %s80
      %p91 = scmp.eq.s32.totalorder %s19, 0
      %p92 = por %p90, %p91
      %p93 = scmp.ne.s32.totalorder %s79, %s80
      %p94 = scmp.eq.s32.totalorder %s20, 1
      %p95 = por %p93, %p94
      %p97 = scmp.ne.s32.totalorder %s80, %s96
      %p98 = scmp.eq.s32.totalorder %s20, 0
      %p99 = por %p97, %p98
      %p100 = scmp.le.s32.totalorder 1, %s14
      %p101 = scmp.lt.s32.totalorder %s14, 3
      %p102 = pnand %p100, %p101
      %p103 = pneg %p102
      // Predicated region
      $region9: #{tpu_custom_call.1} parent=5 // pred_check
        _
      $region10: #{tpu_custom_call.1} parent=5 // pred_check_branch
        %105 = sbr.rel (%p102) target = $region12
      $region11: #{tpu_custom_call.1} parent=5 // pred_region
        %s106 = ssub.s32 %s14, 1
      $region12: #{tpu_custom_call.1} parent=5 // pred_fallthru
        _
      %p107 = scmp.lt.s32.totalorder %s14, 2
      // Predicated region
      $region13: #{tpu_custom_call.1} parent=5 // pred_check
        %p108 = pneg %p107
      $region14: #{tpu_custom_call.1} parent=5 // pred_check_branch
        %110 = sbr.rel (%p108) target = $region16
      $region15: #{tpu_custom_call.1} parent=5 // pred_region
        // Predicated region
        $region17: #{tpu_custom_call.1} parent=15 // pred_check
          %p111 = pneg %p34
        $region18: #{tpu_custom_call.1} parent=15 // pred_check_branch
          %113 = sbr.rel (%p111) target = $region20
        $region19: #{tpu_custom_call.1} parent=15 // pred_region
          %s114 = sand.u32 %s24, 1
          %s115 = scalar_lea.sflag [#allocation3], %s114
          %s116 = sand.u32 %s24, 1
          %s117 = smul.addr %s116, 16
          %s118 = scalar_lea.vmem [#allocation2], %s117
          %s120 = ssub.s32 256, 256
          %121 = vsyncadd %s115, %s120
          %s122 = smul.addr %s14, 2
          %s123 = smul.addr %s122, 128
          %s124 = scalar_lea.hbm %s0, %s123
          %s126 = sshll.u32 %s118, 4
          %s127 = int_to_ptr.vmem [resolvable:$true] %s126
          %129 = dma.hbm_to_vmem [thread:$0]  %s124, 256, %s127, %s115
        $region20: #{tpu_custom_call.1} parent=15 // pred_fallthru
          _
        // Predicated region
        $region21: #{tpu_custom_call.1} parent=15 // pred_check
          %p130 = pneg %p60
        $region22: #{tpu_custom_call.1} parent=15 // pred_check_branch
          %132 = sbr.rel (%p130) target = $region24
        $region23: #{tpu_custom_call.1} parent=15 // pred_region
          %p133 = scmp.lt.s32.totalorder %s14, 1
          %s134 = scalar_select %p133, %s14, 1
          %s135 = smul.addr %s134, 8
          %s136 = scalar_lea.vmem %s1, %s135
        $region24: #{tpu_custom_call.1} parent=15 // pred_fallthru
          _
      $region16: #{tpu_custom_call.1} parent=5 // pred_fallthru
        _
      %p137 = scmp.le.s32.totalorder 1, %s14
      %p138 = scmp.lt.s32.totalorder %s14, 3
      %p139 = pnand %p137, %p138
      %p140 = pneg %p139
      // Predicated region
      $region25: #{tpu_custom_call.1} parent=5 // pred_check
        _
      $region26: #{tpu_custom_call.1} parent=5 // pred_check_branch
        %142 = sbr.rel (%p139) target = $region28
      $region27: #{tpu_custom_call.1} parent=5 // pred_region
        %s143 = ssub.s32 %s14, 1
        %s144 = sand.u32 %s27, 1
        %s145 = scalar_lea.sflag [#allocation3], %s144
        %s146 = sand.u32 %s27, 1
        %s147 = smul.addr %s146, 16
        %s148 = scalar_lea.vmem [#allocation2], %s147
        // Predicated region
        $region29: #{tpu_custom_call.1} parent=27 // pred_check
          %p149 = pneg %p40
        $region30: #{tpu_custom_call.1} parent=27 // pred_check_branch
          %151 = sbr.rel (%p149) target = $region32
        $region31: #{tpu_custom_call.1} parent=27 // pred_region
          %152 = dma.done %s145, 256
        $region32: #{tpu_custom_call.1} parent=27 // pred_fallthru
          _
        %s153 = sand.u32 %s27, 1
        %s154 = scalar_lea.sflag [#allocation3], %s153
        %s155 = sand.u32 %s27, 1
        %s156 = smul.addr %s155, 16
        %s157 = scalar_lea.vmem [#allocation2], %s156
        %p158 = pneg %p40
        %p159 = pneg %p37
        %p160 = scmp.lt.s32.totalorder %s19, 1
        %s161 = scalar_select %p160, %s19, 1
        %s162 = smul.addr %s161, 8
        %s163 = scalar_lea.vmem %s1, %s162
        %p164 = pneg %p66
        %p165 = pneg %p63
        %p166 = pneg %p92
        %p167 = pneg %p89
        %s168 = sand.u32 %s79, 1
        %s169 = scalar_lea.sflag [#allocation4], %s168
        %s170 = sand.u32 %s79, 1
        %s171 = smul.addr %s170, 16
        %s172 = scalar_lea.vmem [#allocation5], %s171
        %p173 = scmp.lt.s32.totalorder %s19, 1
        %s174 = scalar_select %p173, %s19, 1
        %s175 = smul.addr %s174, 8
        %s176 = scalar_lea.vmem %s1, %s175
        %v177 = vld [vmem:[%s148] sm:$0xff]
        %v178 = vld [vmem:[%s148 + $0x8] sm:$0xff]
        %v179 = vld [vmem:[%s176] sm:$0xff]
        %181 = vset.pattern.permute.xlu0 0
        %182 = vperm.xlu0 %181, %v179
        %v183 = vpop.permute.xlu0 %182
        %v185 = vmul.f32 %v177, %v183
        %v186 = vmul.f32 %v178, %v183
        %187 = vst [vmem:[%s172] sm:$0xff] %v185
        %188 = vst [vmem:[%s172 + $0x8] sm:$0xff] %v186
        %s189 = sand.u32 %s79, 1
        %s190 = scalar_lea.sflag [#allocation4], %s189
        %s191 = sand.u32 %s79, 1
        %s192 = smul.addr %s191, 16
        %s193 = scalar_lea.vmem [#allocation5], %s192
        // Predicated region
        $region33: #{tpu_custom_call.1} parent=27 // pred_check
          %p194 = pneg %p89
        $region34: #{tpu_custom_call.1} parent=27 // pred_check_branch
          %196 = sbr.rel (%p194) target = $region36
        $region35: #{tpu_custom_call.1} parent=27 // pred_region
          %s198 = ssub.s32 256, 256
          %199 = vsyncadd %s190, %s198
          %s200 = smul.addr %s19, 2
          %s201 = smul.addr %s200, 128
          %s202 = scalar_lea.hbm %s2, %s201
          %s204 = sshll.u32 %s193, 4
          %s205 = int_to_ptr.vmem [resolvable:$true] %s204
          %207 = dma.vmem_to_hbm [thread:$0]  %s205, 256, %s202, %s190
        $region36: #{tpu_custom_call.1} parent=27 // pred_fallthru
          _
      $region28: #{tpu_custom_call.1} parent=5 // pred_fallthru
        _
      %p208 = scmp.le.s32.totalorder 2, %s14
      // Predicated region
      $region37: #{tpu_custom_call.1} parent=5 // pred_check
        %p209 = pneg %p208
      $region38: #{tpu_custom_call.1} parent=5 // pred_check_branch
        %211 = sbr.rel (%p209) target = $region40
      $region39: #{tpu_custom_call.1} parent=5 // pred_region
        %s212 = ssub.s32 %s14, 2
        // Predicated region
        $region41: #{tpu_custom_call.1} parent=39 // pred_check
          %p213 = pneg %p95
        $region42: #{tpu_custom_call.1} parent=39 // pred_check_branch
          %215 = sbr.rel (%p213) target = $region44
        $region43: #{tpu_custom_call.1} parent=39 // pred_region
          %s216 = sand.u32 %s80, 1
          %s217 = scalar_lea.sflag [#allocation4], %s216
          %s218 = sand.u32 %s80, 1
          %s219 = smul.addr %s218, 16
          %s220 = scalar_lea.vmem [#allocation5], %s219
          %221 = dma.done %s217, 256
        $region44: #{tpu_custom_call.1} parent=39 // pred_fallthru
          _
      $region40: #{tpu_custom_call.1} parent=5 // pred_fallthru
        _
    $region6: #{tpu_custom_call.1} parent=1 // loop_footer
      %s18 = sadd.s32 1, %s14
    $region7: #{tpu_custom_call.1} parent=1 // loop_footer_branch
      %13 = sbr.rel target = $region3
    $region8: #{tpu_custom_call.1} parent=1 // loop_exit
      _
    %222 = vsyncpa [#allocation3], 1
    %s223 = scalar_lea.sflag [#allocation3], 1
    %224 = vsyncpa %s223, 1
    %225 = vsyncpa [#allocation4], 1
    %s226 = scalar_lea.sflag [#allocation4], 1
    %227 = vsyncpa %s226, 1

</llo_original>
